<compile_context>
chip_gen: v7x
topology: tpu7x:2x2x1
jax: 0.10.0
libtpu: 0.0.40
codegen_flags: <defaults>
</compile_context>

<pallas_src>
import functools

import jax
import jax.numpy as jnp
from jax.experimental import pallas as pl
from jax.experimental.pallas import tpu as pltpu


def _round_up(x, m):
    return (x + m - 1) // m * m


def _predictor_kernel(x_ref, w_ref, b_ref, out_ref, *, inv_hw):
    # x_ref : (TN, C, HW)  native NCHW layout flattened; HW on the lane axis.
    # w_ref : (C, OUT_PAD) fused [cls | box] weights, lane-padded to 128.
    # b_ref : (1, OUT_PAD) fused bias, f32.
    # AdaptiveAvgPool2d(1): lane-axis reduce (XLU) with f32 accumulation,
    # followed by a single scale -- no whole-tile f32 materialization.
    pooled = jnp.sum(x_ref[...], axis=-1, dtype=jnp.float32) * inv_hw     # (TN, C)
    # MXU matmul in the weights' native dtype (bf16 fast path if bf16),
    # f32 accumulation.
    out = jnp.dot(pooled.astype(w_ref.dtype), w_ref[...],
                  preferred_element_type=jnp.float32)
    out = out + b_ref[...]
    out_ref[...] = out.astype(out_ref.dtype)


def fast_rcnn_predictor(x, w_cls, b_cls, w_box, b_box, *,
                        tn=None, param_dtype=None, out_dtype=jnp.float32):
    """x: (N, C, H, W); w_cls: (num_classes, C); w_box: (num_box_out, C)."""
    N, C, H, W = x.shape
    HW = H * W
    num_classes = w_cls.shape[0]
    num_box_out = w_box.shape[0]
    out_total = num_classes + num_box_out
    out_pad = _round_up(out_total, 128)          # lane-dense, unmasked stores

    # Native layout, no transpose: (N, C, HW).  Reshape is free (row-major).
    x_nchw = x.reshape(N, C, HW)

    # Fused weights / bias.  Weights stay in param_dtype (defaults to x.dtype,
    # so bf16 features -> bf16 MXU path); bias kept in f32.
    if param_dtype is None:
        param_dtype = x.dtype
    w_all = jnp.concatenate([w_cls, w_box], axis=0).T.astype(param_dtype)  # (C, out_total)
    b_all = jnp.concatenate([b_cls, b_box], axis=0).astype(jnp.float32)
    if out_pad != out_total:
        w_all = jnp.pad(w_all, ((0, 0), (0, out_pad - out_total)))
        b_all = jnp.pad(b_all, ((0, out_pad - out_total),))
    b_all = b_all.reshape(1, out_pad)

    # ---- VMEM-budget-driven tile size ------------------------------------
    try:
        vmem_cap = int(pltpu.get_tpu_info().vmem_capacity_bytes)
    except Exception:
        vmem_cap = 64 * 1024 * 1024              # conservative (v7x per-TC)
    budget = min(int(vmem_cap * 0.7), 100 * 1024 * 1024)

    x_item = jnp.dtype(x.dtype).itemsize
    w_item = jnp.dtype(param_dtype).itemsize
    o_item = jnp.dtype(out_dtype).itemsize
    c_pad8 = _round_up(C, 8)
    hw_pad128 = _round_up(HW, 128)
    # Weights counted double-buffered here to stay safe even if Buffered(1)
    # is unavailable; bias padded to 8 sublanes.
    fixed_bytes = 2 * c_pad8 * out_pad * w_item + 2 * 8 * out_pad * 4
    per_row = 2 * c_pad8 * hw_pad128 * x_item + 2 * out_pad * o_item
    avail = budget - fixed_bytes - 2 * 1024 * 1024        # small headroom
    if tn is None:
        tn = max(8, (avail // per_row) // 8 * 8) if avail > 0 else 8
        tn = min(tn, 512)
        # Keep the grid at >= ~4 steps when N allows (pipelining + v7x TCs).
        tn = max(8, min(tn, _round_up(pl.cdiv(N, 4), 8)))

    n_pad = _round_up(N, tn)
    if n_pad != N:
        x_nchw = jnp.pad(x_nchw, ((0, n_pad - N), (0, 0), (0, 0)))

    grid = (n_pad // tn,)
    kernel = functools.partial(_predictor_kernel, inv_hw=1.0 / float(HW))

    bytes_accessed = (x_nchw.size * x_item
                      + w_all.size * w_item
                      + b_all.size * 4
                      + N * out_total * o_item)
    cost = pl.CostEstimate(
        flops=2 * N * C * out_total,
        transcendentals=0,
        bytes_accessed=int(bytes_accessed),
    )
    compiler_params = pltpu.CompilerParams(
        dimension_semantics=("parallel",),
        vmem_limit_bytes=int(budget),
    )

    def _run(single_buffer_resident):
        if single_buffer_resident:
            w_spec = pl.BlockSpec((C, out_pad), lambda i: (0, 0),
                                  pipeline_mode=pl.Buffered(1))
            b_spec = pl.BlockSpec((1, out_pad), lambda i: (0, 0),
                                  pipeline_mode=pl.Buffered(1))
        else:
            w_spec = pl.BlockSpec((C, out_pad), lambda i: (0, 0))
            b_spec = pl.BlockSpec((1, out_pad), lambda i: (0, 0))
        return pl.pallas_call(
            kernel,
            out_shape=jax.ShapeDtypeStruct((n_pad, out_pad), out_dtype),
            grid=grid,
            in_specs=[
                pl.BlockSpec((tn, C, HW), lambda i: (i, 0, 0)),   # streamed x
                w_spec,                                           # resident W
                b_spec,                                           # resident b
            ],
            out_specs=pl.BlockSpec((tn, out_pad), lambda i: (i, 0)),
            compiler_params=compiler_params,
            cost_estimate=cost,
        )(x_nchw, w_all, b_all)

    try:
        out = _run(True)
    except Exception:
        # Fallback if single-buffered resident specs are rejected by this
        # jax/pallas version: default double-buffering (tn budget already
        # accounts for it).
        out = _run(False)

    cls_logit = out[:N, :num_classes]
    bbox_pred = out[:N, num_classes:out_total]
    return cls_logit, bbox_pred


if __name__ == "__main__":
    # Synthetic config: in_channels=4, NUM_CLASSES=8, CLS_AGNOSTIC_BBOX_REG=False
    N, C, H, W = 2, 4, 16, 16
    num_classes = 8
    num_bbox_reg_classes = num_classes          # not class-agnostic
    num_box_out = num_bbox_reg_classes * 4

    key = jax.random.PRNGKey(0)
    kx, kc, kb = jax.random.split(key, 3)

    x = jax.random.normal(kx, (N, C, H, W), dtype=jnp.float32)

    # Deterministic init matching nn.init in __init__:
    #   cls_score.weight ~ N(0, 0.01), bias = 0
    #   bbox_pred.weight ~ N(0, 0.001), bias = 0
    w_cls = 0.01 * jax.random.normal(kc, (num_classes, C), dtype=jnp.float32)
    b_cls = jnp.zeros((num_classes,), dtype=jnp.float32)
    w_box = 0.001 * jax.random.normal(kb, (num_box_out, C), dtype=jnp.float32)
    b_box = jnp.zeros((num_box_out,), dtype=jnp.float32)

    cls_logit, bbox_pred = fast_rcnn_predictor(x, w_cls, b_cls, w_box, b_box)
    jax.block_until_ready((cls_logit, bbox_pred))

    # Reference check in plain JAX.
    pooled_ref = jnp.mean(x, axis=(2, 3))
    cls_ref = pooled_ref @ w_cls.T + b_cls
    box_ref = pooled_ref @ w_box.T + b_box
    assert cls_logit.shape == (N, num_classes)
    assert bbox_pred.shape == (N, num_box_out)
    assert jnp.allclose(cls_logit, cls_ref, atol=1e-5)
    assert jnp.allclose(bbox_pred, box_ref, atol=1e-5)

    print("KERNEL_OK")
</pallas_src>

<mosaic_0001>
module attributes {stable_mosaic.version = 11 : i64} {
  func.func @_predictor_kernel(%arg0: i32, %arg1: memref<8x4x256xf32, #tpu.memory_space<vmem>>, %arg2: memref<4x128xf32, #tpu.memory_space<vmem>>, %arg3: memref<1x128xf32, #tpu.memory_space<vmem>>, %arg4: memref<8x128xf32, #tpu.memory_space<vmem>>) attributes {dimension_semantics = [#tpu.dimension_semantics<parallel>], iteration_bounds = array<i64: 1>, scalar_prefetch = 0 : i64, scratch_operands = 0 : i64, tpu.core_type = #tpu.core_type<tc>, window_params = [{transform_indices = @transform_0, window_bounds = array<i64: 8, 4, 256>}, {pipeline_mode = #tpu.pipeline_mode<synchronous>, transform_indices = @transform_1, window_bounds = array<i64: 4, 128>}, {pipeline_mode = #tpu.pipeline_mode<synchronous>, transform_indices = @transform_2, window_bounds = array<i64: 1, 128>}, {transform_indices = @transform_3, window_bounds = array<i64: 8, 128>}]} {
    %c0 = arith.constant 0 : index
    %c0_0 = arith.constant 0 : index
    %c0_1 = arith.constant 0 : index
    %0 = vector.load %arg1[%c0, %c0_0, %c0_1] : memref<8x4x256xf32, #tpu.memory_space<vmem>>, vector<8x4x256xf32>
    %cst = arith.constant dense<0.000000e+00> : vector<8x4xf32>
    %1 = vector.multi_reduction <add>, %0, %cst [2] : vector<8x4x256xf32> to vector<8x4xf32>
    %cst_2 = arith.constant 3.906250e-03 : f32
    %2 = vector.broadcast %cst_2 : f32 to vector<8x4xf32>
    %3 = arith.mulf %1, %2 : vector<8x4xf32>
    %c0_3 = arith.constant 0 : index
    %c0_4 = arith.constant 0 : index
    %4 = vector.load %arg2[%c0_3, %c0_4] : memref<4x128xf32, #tpu.memory_space<vmem>>, vector<4x128xf32>
    %cst_5 = arith.constant dense<0.000000e+00> : vector<8x128xf32>
    %5 = tpu.matmul %3, %4, %cst_5 {dimension_numbers = #tpu.dot_dimension_numbers<[1], [0], [0], [1], [0, 0, 1, 1], [], []>} : vector<8x4xf32>, vector<4x128xf32>, vector<8x128xf32> -> vector<8x128xf32>
    %c0_6 = arith.constant 0 : index
    %c0_7 = arith.constant 0 : index
    %6 = vector.load %arg3[%c0_6, %c0_7] : memref<1x128xf32, #tpu.memory_space<vmem>>, vector<1x128xf32>
    %7 = vector.broadcast %6 : vector<1x128xf32> to vector<8x128xf32>
    %8 = arith.addf %5, %7 : vector<8x128xf32>
    %c0_8 = arith.constant 0 : index
    %c0_9 = arith.constant 0 : index
    %9 = vector.load %arg4[%c0_8, %c0_9] : memref<8x128xf32, #tpu.memory_space<vmem>>, vector<8x128xf32>
    tpu.vector_store %arg4[%c0_8, %c0_9], %8 {strides = array<i32>} : memref<8x128xf32, #tpu.memory_space<vmem>>, vector<8x128xf32>,
    return
  }
  func.func @transform_0(%arg0: i32) -> (i32, i32, i32) {
    %c0_i32 = arith.constant 0 : i32
    %c0_i32_0 = arith.constant 0 : i32
    %c0_i32_1 = arith.constant 0 : i32
    return %arg0, %c0_i32, %c0_i32_0 : i32, i32, i32
  }
  func.func @transform_1(%arg0: i32) -> (i32, i32) {
    %c0_i32 = arith.constant 0 : i32
    %c0_i32_0 = arith.constant 0 : i32
    %c0_i32_1 = arith.constant 0 : i32
    return %c0_i32, %c0_i32_0 : i32, i32
  }
  func.func @transform_2(%arg0: i32) -> (i32, i32) {
    %c0_i32 = arith.constant 0 : i32
    %c0_i32_0 = arith.constant 0 : i32
    %c0_i32_1 = arith.constant 0 : i32
    return %c0_i32, %c0_i32_0 : i32, i32
  }
  func.func @transform_3(%arg0: i32) -> (i32, i32) {
    %c0_i32 = arith.constant 0 : i32
    %c0_i32_0 = arith.constant 0 : i32
    return %arg0, %c0_i32 : i32, i32
  }
}

module attributes {stable_mosaic.version = 11 : i64} {
  func.func @_predictor_kernel(%arg0: i32, %arg1: memref<8x4x256xf32, #tpu.memory_space<vmem>>, %arg2: memref<4x128xf32, #tpu.memory_space<vmem>>, %arg3: memref<1x128xf32, #tpu.memory_space<vmem>>, %arg4: memref<8x128xf32, #tpu.memory_space<vmem>>) attributes {dimension_semantics = [#tpu.dimension_semantics<parallel>], iteration_bounds = array<i64: 1>, scalar_prefetch = 0 : i64, scratch_operands = 0 : i64, tpu.core_type = #tpu.core_type<tc>, window_params = [{transform_indices = @transform_0, window_bounds = array<i64: 8, 4, 256>}, {pipeline_mode = #tpu.pipeline_mode<synchronous>, transform_indices = @transform_1, window_bounds = array<i64: 4, 128>}, {pipeline_mode = #tpu.pipeline_mode<synchronous>, transform_indices = @transform_2, window_bounds = array<i64: 1, 128>}, {transform_indices = @transform_3, window_bounds = array<i64: 8, 128>}]} {
    %c0 = arith.constant 0 : index
    %c0_0 = arith.constant 0 : index
    %c0_1 = arith.constant 0 : index
    %0 = vector.load %arg1[%c0, %c0_0, %c0_1] : memref<8x4x256xf32, #tpu.memory_space<vmem>>, vector<8x4x256xf32>
    %cst = arith.constant dense<0.000000e+00> : vector<8x4xf32>
    %1 = vector.multi_reduction <add>, %0, %cst [2] : vector<8x4x256xf32> to vector<8x4xf32>
    %cst_2 = arith.constant 3.906250e-03 : f32
    %2 = vector.broadcast %cst_2 : f32 to vector<8x4xf32>
    %3 = arith.mulf %1, %2 : vector<8x4xf32>
    %c0_3 = arith.constant 0 : index
    %c0_4 = arith.constant 0 : index
    %4 = vector.load %arg2[%c0_3, %c0_4] : memref<4x128xf32, #tpu.memory_space<vmem>>, vector<4x128xf32>
    %cst_5 = arith.constant dense<0.000000e+00> : vector<8x128xf32>
    %5 = tpu.matmul %3, %4, %cst_5 {dimension_numbers = #tpu.dot_dimension_numbers<[1], [0], [0], [1], [0, 0, 1, 1], [], []>} : vector<8x4xf32>, vector<4x128xf32>, vector<8x128xf32> -> vector<8x128xf32>
    %c0_6 = arith.constant 0 : index
    %c0_7 = arith.constant 0 : index
    %6 = vector.load %arg3[%c0_6, %c0_7] : memref<1x128xf32, #tpu.memory_space<vmem>>, vector<1x128xf32>
    %7 = vector.broadcast %6 : vector<1x128xf32> to vector<8x128xf32>
    %8 = arith.addf %5, %7 : vector<8x128xf32>
    %c0_8 = arith.constant 0 : index
    %c0_9 = arith.constant 0 : index
    %9 = vector.load %arg4[%c0_8, %c0_9] : memref<8x128xf32, #tpu.memory_space<vmem>>, vector<8x128xf32>
    tpu.vector_store %arg4[%c0_8, %c0_9], %8 {strides = array<i32>} : memref<8x128xf32, #tpu.memory_space<vmem>>, vector<8x128xf32>,
    return
  }
  func.func @transform_0(%arg0: i32) -> (i32, i32, i32) {
    %c0_i32 = arith.constant 0 : i32
    %c0_i32_0 = arith.constant 0 : i32
    %c0_i32_1 = arith.constant 0 : i32
    return %arg0, %c0_i32, %c0_i32_0 : i32, i32, i32
  }
  func.func @transform_1(%arg0: i32) -> (i32, i32) {
    %c0_i32 = arith.constant 0 : i32
    %c0_i32_0 = arith.constant 0 : i32
    %c0_i32_1 = arith.constant 0 : i32
    return %c0_i32, %c0_i32_0 : i32, i32
  }
  func.func @transform_2(%arg0: i32) -> (i32, i32) {
    %c0_i32 = arith.constant 0 : i32
    %c0_i32_0 = arith.constant 0 : i32
    %c0_i32_1 = arith.constant 0 : i32
    return %c0_i32, %c0_i32_0 : i32, i32
  }
  func.func @transform_3(%arg0: i32) -> (i32, i32) {
    %c0_i32 = arith.constant 0 : i32
    %c0_i32_0 = arith.constant 0 : i32
    return %arg0, %c0_i32 : i32, i32
  }
}

</mosaic_0001>

<llo_original>
// kernel: tpu_custom_call.1
$region0: #{tpu_custom_call.1}
  #allocation0 [shape = 'u32[]', space=smem, size = 0x4, offset = 0x4, fixed_abs, tag = 'smem constant byte address 0x4 - core index']
  #allocation1 [shape = 'u32[144,128]{1,0:T(1,128)}', space=vmem, size = 0x12000, scoped, tag = 'internal scratch']
  %s0 = inlined_call_operand.hbm [shape: f32[8,4,256], index: 0, kind: input, shape index: {}]
  %s1 = inlined_call_operand.hbm [shape: f32[4,128], index: 1, kind: input, shape index: {}]
  %s2 = inlined_call_operand.vmem [shape: f32[1,128], index: 2, kind: input, shape index: {}]
  %s3 = inlined_call_operand.hbm [shape: f32[8,128], index: 3, kind: output, shape index: {}]
  %s4 = sld [smem:[#allocation0]]
  $region30: #{tpu_custom_call.1} parent=0
    _
  %s6 = ssub.s32 1, %s4
  %s7 = scalar_select 0, %s6, %s4
  $region1: #{tpu_custom_call.1} parent=0
    #allocation2 [shape = 'u8[32768]{0}', space=vmem, size = 0x8000, scoped, tag = 'input window, operand 0, single buffered']
    #allocation3 [shape = 's32[1]{0}', space=sflag, size = 0x4, scoped, tag = 'scoped memory for tpu_custom_call.1']
    #allocation4 [shape = 's32[1]{0}', space=sflag, size = 0x4, scoped, tag = 'scoped memory for tpu_custom_call.1']
    #allocation5 [shape = 'u8[2048]{0}', space=vmem, size = 0x800, scoped, tag = 'input window, operand 1, single buffered']
    #allocation6 [shape = 's32[1]{0}', space=sflag, size = 0x4, scoped, tag = 'scoped memory for tpu_custom_call.1']
    #allocation7 [shape = 'u8[4096]{0}', space=vmem, size = 0x1000, scoped, tag = 'output window, operand 0, single buffered']
    %8 = vsyncpa [#allocation3], 0
    %9 = vsyncpa [#allocation6], 0
    %10 = vsyncpa [#allocation4], 0
    // Predicated region
    $region2: #{tpu_custom_call.1} parent=1 // pred_check
      _
    $region3: #{tpu_custom_call.1} parent=1 // pred_check_branch
      %12 = sbr.rel (0) target = $region5
    $region4: #{tpu_custom_call.1} parent=1 // pred_region
      %s14 = ssub.s32 1024, 1024
      %15 = vsyncadd [#allocation3], %s14
      %s16 = sshll.u32 [#allocation2], 4
      %s17 = int_to_ptr.vmem [resolvable:$true] %s16
      %22 = dma.hbm_to_vmem [thread:$0]  %s0, 1024, %s17, [#allocation3], 128, 128, 8
    $region5: #{tpu_custom_call.1} parent=1 // pred_fallthru
      _
    // Predicated region
    $region6: #{tpu_custom_call.1} parent=1 // pred_check
      _
    $region7: #{tpu_custom_call.1} parent=1 // pred_check_branch
      %24 = sbr.rel (0) target = $region9
    $region8: #{tpu_custom_call.1} parent=1 // pred_region
      %s26 = ssub.s32 64, 64
      %27 = vsyncadd [#allocation6], %s26
      %s29 = sshll.u32 [#allocation5], 4
      %s30 = int_to_ptr.vmem [resolvable:$true] %s29
      %32 = dma.hbm_to_vmem [thread:$0]  %s1, 64, %s30, [#allocation6]
    $region9: #{tpu_custom_call.1} parent=1 // pred_fallthru
      _
    // Predicated region
    $region10: #{tpu_custom_call.1} parent=1 // pred_check
      _
    $region11: #{tpu_custom_call.1} parent=1 // pred_check_branch
      %34 = sbr.rel (0) target = $region13
    $region12: #{tpu_custom_call.1} parent=1 // pred_region
      _
    $region13: #{tpu_custom_call.1} parent=1 // pred_fallthru
      _
    // Predicated region
    $region14: #{tpu_custom_call.1} parent=1 // pred_check
      _
    $region15: #{tpu_custom_call.1} parent=1 // pred_check_branch
      %36 = sbr.rel (0) target = $region17
    $region16: #{tpu_custom_call.1} parent=1 // pred_region
      %37 = dma.done [#allocation3], 1024
    $region17: #{tpu_custom_call.1} parent=1 // pred_fallthru
      _
    // Predicated region
    $region18: #{tpu_custom_call.1} parent=1 // pred_check
      _
    $region19: #{tpu_custom_call.1} parent=1 // pred_check_branch
      %39 = sbr.rel (0) target = $region21
    $region20: #{tpu_custom_call.1} parent=1 // pred_region
      %40 = dma.done [#allocation6], 64
    $region21: #{tpu_custom_call.1} parent=1 // pred_fallthru
      _
    %v41 = vld [vmem:[#allocation2] sm:$0xff]
    %v42 = vld [vmem:[#allocation2 + $0x8] sm:$0xff]
    %v43 = vld [vmem:[#allocation2 + $0x10] sm:$0xff]
    %v44 = vld [vmem:[#allocation2 + $0x18] sm:$0xff]
    %v45 = vld [vmem:[#allocation2 + $0x20] sm:$0xff]
    %v46 = vld [vmem:[#allocation2 + $0x28] sm:$0xff]
    %v47 = vld [vmem:[#allocation2 + $0x30] sm:$0xff]
    %v48 = vld [vmem:[#allocation2 + $0x38] sm:$0xff]
    %v57 = vcombine.high %v41, %v41
    %v58 = vcombine.high %v42, %v42
    %v59 = vcombine.high %v43, %v43
    %v60 = vcombine.high %v44, %v44
    %v61 = vcombine.high %v45, %v45
    %v62 = vcombine.high %v46, %v46
    %v63 = vcombine.high %v47, %v47
    %v64 = vcombine.high %v48, %v48
    %vm73 = vcmask 1043456
    %v74 = vsel %vm73, %v41, 0.0
    %v75 = vsel %vm73, %v57, 0.0
    %v76 = vadd.f32 %v74, %v75
    %77 = vadd.xlane.f32.xlu0 %v76
    %v78 = vpop.xlane.xlu0 %77
    %v79 = vsel %vm73, %v42, 0.0
    %v80 = vsel %vm73, %v58, 0.0
    %v81 = vadd.f32 %v79, %v80
    %82 = vadd.xlane.f32.xlu0 %v81
    %v83 = vpop.xlane.xlu0 %82
    %v84 = vsel %vm73, %v43, 0.0
    %v85 = vsel %vm73, %v59, 0.0
    %v86 = vadd.f32 %v84, %v85
    %87 = vadd.xlane.f32.xlu0 %v86
    %v88 = vpop.xlane.xlu0 %87
    %v89 = vsel %vm73, %v44, 0.0
    %v90 = vsel %vm73, %v60, 0.0
    %v91 = vadd.f32 %v89, %v90
    %92 = vadd.xlane.f32.xlu0 %v91
    %v93 = vpop.xlane.xlu0 %92
    %v94 = vsel %vm73, %v45, 0.0
    %v95 = vsel %vm73, %v61, 0.0
    %v96 = vadd.f32 %v94, %v95
    %97 = vadd.xlane.f32.xlu0 %v96
    %v98 = vpop.xlane.xlu0 %97
    %v99 = vsel %vm73, %v46, 0.0
    %v100 = vsel %vm73, %v62, 0.0
    %v101 = vadd.f32 %v99, %v100
    %102 = vadd.xlane.f32.xlu0 %v101
    %v103 = vpop.xlane.xlu0 %102
    %v104 = vsel %vm73, %v47, 0.0
    %v105 = vsel %vm73, %v63, 0.0
    %v106 = vadd.f32 %v104, %v105
    %107 = vadd.xlane.f32.xlu0 %v106
    %v108 = vpop.xlane.xlu0 %107
    %v109 = vsel %vm73, %v48, 0.0
    %v110 = vsel %vm73, %v64, 0.0
    %v111 = vadd.f32 %v109, %v110
    %112 = vadd.xlane.f32.xlu0 %v111
    %v113 = vpop.xlane.xlu0 %112
    %v114 = vmul.f32 %v78, 0.00390625
    %v115 = vmul.f32 %v83, 0.00390625
    %v116 = vmul.f32 %v88, 0.00390625
    %v117 = vmul.f32 %v93, 0.00390625
    %v118 = vmul.f32 %v98, 0.00390625
    %v119 = vmul.f32 %v103, 0.00390625
    %v120 = vmul.f32 %v108, 0.00390625
    %v121 = vmul.f32 %v113, 0.00390625
    %v122 = vld [vmem:[#allocation5] sm:$0xf]
    %v123 = vld [vmem:[%s2] sm:$0x1]
    %v125 = vlaneseq
    %v126 = vshrl.u32 %v125, 7
    %v127 = vsub.s32 0, %v126
    %v128 = vrot.slane %v123, %v127
    %v138 = vlaneseq
    %v139 = vand.u32 %v138, 127
    %v140 = vlaneseq
    %v141 = vshrl.u32 %v140, 7
    %v142 = vsub.s32 %v139, %v141
    %v143 = vrot.slane %v114, %v142
    %v144 = vlaneseq
    %v145 = vshrl.u32 %v144, 7
    %v146 = vsub.s32 %v139, %v145
    %v147 = vrot.slane %v115, %v146
    %v148 = vlaneseq
    %v149 = vshrl.u32 %v148, 7
    %v150 = vsub.s32 %v139, %v149
    %v151 = vrot.slane %v116, %v150
    %v152 = vlaneseq
    %v153 = vshrl.u32 %v152, 7
    %v154 = vsub.s32 %v139, %v153
    %v155 = vrot.slane %v117, %v154
    %v156 = vlaneseq
    %v157 = vshrl.u32 %v156, 7
    %v158 = vsub.s32 %v139, %v157
    %v159 = vrot.slane %v118, %v158
    %v160 = vlaneseq
    %v161 = vshrl.u32 %v160, 7
    %v162 = vsub.s32 %v139, %v161
    %v163 = vrot.slane %v119, %v162
    %v164 = vlaneseq
    %v165 = vshrl.u32 %v164, 7
    %v166 = vsub.s32 %v139, %v165
    %v167 = vrot.slane %v120, %v166
    %v168 = vlaneseq
    %v169 = vshrl.u32 %v168, 7
    %v170 = vsub.s32 %v139, %v169
    %v171 = vrot.slane %v121, %v170
    %vm172 = vcmask 1041409
    %v173 = vsel %vm172, %v147, %v143
    %vm174 = vcmask 1042434
    %v175 = vsel %vm174, %v151, %v173
    %vm176 = vcmask 1043459
    %v177 = vsel %vm176, %v155, %v175
    %vm178 = vcmask 1044484
    %v179 = vsel %vm178, %v159, %v177
    %vm180 = vcmask 1045509
    %v181 = vsel %vm180, %v163, %v179
    %vm182 = vcmask 1046534
    %v183 = vsel %vm182, %v167, %v181
    %vm184 = vcmask 1047559
    %v185 = vsel %vm184, %v171, %v183
    %vm186 = vcmask 31744
    %v187 = vsel %vm186, %v185, 0
    %v190 = vsel %vm73, %v122, 0
    %192 = vmatprep.subr.mxu0 0.0
    %193 = vmatpush1.msra.mxu0 %v190
    %194 = vmatprep.subr.mxu0 0.0
    %195 = vmatpush1.msra.mxu0 0.0
    %196 = vmatprep.subr.mxu0 0.0
    %197 = vmatpush1.msra.mxu0 0.0
    %198 = vmatprep.subr.mxu0 0.0
    %199 = vmatpush1.msra.mxu0 0.0
    %200 = vmatprep.subr.mxu0 0.0
    %201 = vmatpush1.msra.mxu0 0.0
    %202 = vmatprep.subr.mxu0 0.0
    %203 = vmatpush1.msra.mxu0 0.0
    %204 = vmatprep.subr.mxu0 0.0
    %205 = vmatpush1.msra.mxu0 0.0
    %206 = vmatprep.subr.mxu0 0.0
    %207 = vmatpush1.msra.mxu0 0.0
    %208 = vmatprep.subr.mxu0 0.0
    %209 = vmatpush1.msra.mxu0 0.0
    %210 = vmatprep.subr.mxu0 0.0
    %211 = vmatpush1.msra.mxu0 0.0
    %212 = vmatprep.subr.mxu0 0.0
    %213 = vmatpush1.msra.mxu0 0.0
    %214 = vmatprep.subr.mxu0 0.0
    %215 = vmatpush1.msra.mxu0 0.0
    %216 = vmatprep.subr.mxu0 0.0
    %217 = vmatpush1.msra.mxu0 0.0
    %218 = vmatprep.subr.mxu0 0.0
    %219 = vmatpush1.msra.mxu0 0.0
    %220 = vmatprep.subr.mxu0 0.0
    %221 = vmatpush1.msra.mxu0 0.0
    %222 = vmatprep.subr.mxu0 0.0
    %223 = vmatpush1.msra.mxu0 0.0
    %224 = vmatprep.subr.mxu0 0.0
    %225 = vmatpush1.msra.mxu0 0.0
    %226 = vmatprep.subr.mxu0 0.0
    %227 = vmatpush1.msra.mxu0 0.0
    %228 = vmatprep.subr.mxu0 0.0
    %229 = vmatpush1.msra.mxu0 0.0
    %230 = vmatprep.subr.mxu0 0.0
    %231 = vmatpush1.msra.mxu0 0.0
    %232 = vmatprep.subr.mxu0 0.0
    %233 = vmatpush1.msra.mxu0 0.0
    %234 = vmatprep.subr.mxu0 0.0
    %235 = vmatpush1.msra.mxu0 0.0
    %236 = vmatprep.subr.mxu0 0.0
    %237 = vmatpush1.msra.mxu0 0.0
    %238 = vmatprep.subr.mxu0 0.0
    %239 = vmatpush1.msra.mxu0 0.0
    %240 = vmatprep.subr.mxu0 0.0
    %241 = vmatpush1.msra.mxu0 0.0
    %242 = vmatprep.subr.mxu0 0.0
    %243 = vmatpush1.msra.mxu0 0.0
    %244 = vmatprep.subr.mxu0 0.0
    %245 = vmatpush1.msra.mxu0 0.0
    %246 = vmatprep.subr.mxu0 0.0
    %247 = vmatpush1.msra.mxu0 0.0
    %248 = vmatprep.subr.mxu0 0.0
    %249 = vmatpush1.msra.mxu0 0.0
    %250 = vmatprep.subr.mxu0 0.0
    %251 = vmatpush1.msra.mxu0 0.0
    %252 = vmatprep.subr.mxu0 0.0
    %253 = vmatpush1.msra.mxu0 0.0
    %254 = vmatprep.subr.mxu0 0.0
    %255 = vmatpush1.msra.mxu0 0.0
    %256 = vmatprep.mubr.f32.mxu0 0.0
    %257 = vmatmul.mubr.f32.gmra.mrb[0].mxu0 %v187
    %v258 = vpop.f32.mrb[0].mxu0
    %v259 = vadd.f32 %v128, %v258
    %v260 = vpop.f32.mrb[0].mxu0
    %261 = vdwg.mxu0
    %262 = vst [vmem:[#allocation7] sm:$0xff] %v259
    // Predicated region
    $region22: #{tpu_custom_call.1} parent=1 // pred_check
      _
    $region23: #{tpu_custom_call.1} parent=1 // pred_check_branch
      %264 = sbr.rel (0) target = $region25
    $region24: #{tpu_custom_call.1} parent=1 // pred_region
      %s266 = ssub.s32 128, 128
      %267 = vsyncadd [#allocation4], %s266
      %s269 = sshll.u32 [#allocation7], 4
      %s270 = int_to_ptr.vmem [resolvable:$true] %s269
      %272 = dma.vmem_to_hbm [thread:$0]  %s270, 128, %s3, [#allocation4]
    $region25: #{tpu_custom_call.1} parent=1 // pred_fallthru
      _
    // Predicated region
    $region26: #{tpu_custom_call.1} parent=1 // pred_check
      _
    $region27: #{tpu_custom_call.1} parent=1 // pred_check_branch
      %274 = sbr.rel (0) target = $region29
    $region28: #{tpu_custom_call.1} parent=1 // pred_region
      %275 = dma.done [#allocation4], 128
    $region29: #{tpu_custom_call.1} parent=1 // pred_fallthru
      _
    %276 = vsyncpa [#allocation3], 1
    %277 = vsyncpa [#allocation6], 1
    %278 = vsyncpa [#allocation4], 1

// kernel: tpu_custom_call.1
$region0: #{tpu_custom_call.1}
  #allocation0 [shape = 'u32[]', space=smem, size = 0x4, offset = 0x4, fixed_abs, tag = 'smem constant byte address 0x4 - core index']
  #allocation1 [shape = 'u32[144,128]{1,0:T(1,128)}', space=vmem, size = 0x12000, scoped, tag = 'internal scratch']
  %s0 = inlined_call_operand.hbm [shape: f32[8,4,256], index: 0, kind: input, shape index: {}]
  %s1 = inlined_call_operand.hbm [shape: f32[4,128], index: 1, kind: input, shape index: {}]
  %s2 = inlined_call_operand.vmem [shape: f32[1,128], index: 2, kind: input, shape index: {}]
  %s3 = inlined_call_operand.hbm [shape: f32[8,128], index: 3, kind: output, shape index: {}]
  %s4 = sld [smem:[#allocation0]]
  $region30: #{tpu_custom_call.1} parent=0
    _
  %s6 = ssub.s32 1, %s4
  %s7 = scalar_select 0, %s6, %s4
  $region1: #{tpu_custom_call.1} parent=0
    #allocation2 [shape = 'u8[32768]{0}', space=vmem, size = 0x8000, scoped, tag = 'input window, operand 0, single buffered']
    #allocation3 [shape = 's32[1]{0}', space=sflag, size = 0x4, scoped, tag = 'scoped memory for tpu_custom_call.1']
    #allocation4 [shape = 's32[1]{0}', space=sflag, size = 0x4, scoped, tag = 'scoped memory for tpu_custom_call.1']
    #allocation5 [shape = 'u8[2048]{0}', space=vmem, size = 0x800, scoped, tag = 'input window, operand 1, single buffered']
    #allocation6 [shape = 's32[1]{0}', space=sflag, size = 0x4, scoped, tag = 'scoped memory for tpu_custom_call.1']
    #allocation7 [shape = 'u8[4096]{0}', space=vmem, size = 0x1000, scoped, tag = 'output window, operand 0, single buffered']
    %8 = vsyncpa [#allocation3], 0
    %9 = vsyncpa [#allocation6], 0
    %10 = vsyncpa [#allocation4], 0
    // Predicated region
    $region2: #{tpu_custom_call.1} parent=1 // pred_check
      _
    $region3: #{tpu_custom_call.1} parent=1 // pred_check_branch
      %12 = sbr.rel (0) target = $region5
    $region4: #{tpu_custom_call.1} parent=1 // pred_region
      %s14 = ssub.s32 1024, 1024
      %15 = vsyncadd [#allocation3], %s14
      %s16 = sshll.u32 [#allocation2], 4
      %s17 = int_to_ptr.vmem [resolvable:$true] %s16
      %22 = dma.hbm_to_vmem [thread:$0]  %s0, 1024, %s17, [#allocation3], 128, 128, 8
    $region5: #{tpu_custom_call.1} parent=1 // pred_fallthru
      _
    // Predicated region
    $region6: #{tpu_custom_call.1} parent=1 // pred_check
      _
    $region7: #{tpu_custom_call.1} parent=1 // pred_check_branch
      %24 = sbr.rel (0) target = $region9
    $region8: #{tpu_custom_call.1} parent=1 // pred_region
      %s26 = ssub.s32 64, 64
      %27 = vsyncadd [#allocation6], %s26
      %s29 = sshll.u32 [#allocation5], 4
      %s30 = int_to_ptr.vmem [resolvable:$true] %s29
      %32 = dma.hbm_to_vmem [thread:$0]  %s1, 64, %s30, [#allocation6]
    $region9: #{tpu_custom_call.1} parent=1 // pred_fallthru
      _
    // Predicated region
    $region10: #{tpu_custom_call.1} parent=1 // pred_check
      _
    $region11: #{tpu_custom_call.1} parent=1 // pred_check_branch
      %34 = sbr.rel (0) target = $region13
    $region12: #{tpu_custom_call.1} parent=1 // pred_region
      _
    $region13: #{tpu_custom_call.1} parent=1 // pred_fallthru
      _
    // Predicated region
    $region14: #{tpu_custom_call.1} parent=1 // pred_check
      _
    $region15: #{tpu_custom_call.1} parent=1 // pred_check_branch
      %36 = sbr.rel (0) target = $region17
    $region16: #{tpu_custom_call.1} parent=1 // pred_region
      %37 = dma.done [#allocation3], 1024
    $region17: #{tpu_custom_call.1} parent=1 // pred_fallthru
      _
    // Predicated region
    $region18: #{tpu_custom_call.1} parent=1 // pred_check
      _
    $region19: #{tpu_custom_call.1} parent=1 // pred_check_branch
      %39 = sbr.rel (0) target = $region21
    $region20: #{tpu_custom_call.1} parent=1 // pred_region
      %40 = dma.done [#allocation6], 64
    $region21: #{tpu_custom_call.1} parent=1 // pred_fallthru
      _
    %v41 = vld [vmem:[#allocation2] sm:$0xff]
    %v42 = vld [vmem:[#allocation2 + $0x8] sm:$0xff]
    %v43 = vld [vmem:[#allocation2 + $0x10] sm:$0xff]
    %v44 = vld [vmem:[#allocation2 + $0x18] sm:$0xff]
    %v45 = vld [vmem:[#allocation2 + $0x20] sm:$0xff]
    %v46 = vld [vmem:[#allocation2 + $0x28] sm:$0xff]
    %v47 = vld [vmem:[#allocation2 + $0x30] sm:$0xff]
    %v48 = vld [vmem:[#allocation2 + $0x38] sm:$0xff]
    %v57 = vcombine.high %v41, %v41
    %v58 = vcombine.high %v42, %v42
    %v59 = vcombine.high %v43, %v43
    %v60 = vcombine.high %v44, %v44
    %v61 = vcombine.high %v45, %v45
    %v62 = vcombine.high %v46, %v46
    %v63 = vcombine.high %v47, %v47
    %v64 = vcombine.high %v48, %v48
    %vm73 = vcmask 1043456
    %v74 = vsel %vm73, %v41, 0.0
    %v75 = vsel %vm73, %v57, 0.0
    %v76 = vadd.f32 %v74, %v75
    %77 = vadd.xlane.f32.xlu0 %v76
    %v78 = vpop.xlane.xlu0 %77
    %v79 = vsel %vm73, %v42, 0.0
    %v80 = vsel %vm73, %v58, 0.0
    %v81 = vadd.f32 %v79, %v80
    %82 = vadd.xlane.f32.xlu0 %v81
    %v83 = vpop.xlane.xlu0 %82
    %v84 = vsel %vm73, %v43, 0.0
    %v85 = vsel %vm73, %v59, 0.0
    %v86 = vadd.f32 %v84, %v85
    %87 = vadd.xlane.f32.xlu0 %v86
    %v88 = vpop.xlane.xlu0 %87
    %v89 = vsel %vm73, %v44, 0.0
    %v90 = vsel %vm73, %v60, 0.0
    %v91 = vadd.f32 %v89, %v90
    %92 = vadd.xlane.f32.xlu0 %v91
    %v93 = vpop.xlane.xlu0 %92
    %v94 = vsel %vm73, %v45, 0.0
    %v95 = vsel %vm73, %v61, 0.0
    %v96 = vadd.f32 %v94, %v95
    %97 = vadd.xlane.f32.xlu0 %v96
    %v98 = vpop.xlane.xlu0 %97
    %v99 = vsel %vm73, %v46, 0.0
    %v100 = vsel %vm73, %v62, 0.0
    %v101 = vadd.f32 %v99, %v100
    %102 = vadd.xlane.f32.xlu0 %v101
    %v103 = vpop.xlane.xlu0 %102
    %v104 = vsel %vm73, %v47, 0.0
    %v105 = vsel %vm73, %v63, 0.0
    %v106 = vadd.f32 %v104, %v105
    %107 = vadd.xlane.f32.xlu0 %v106
    %v108 = vpop.xlane.xlu0 %107
    %v109 = vsel %vm73, %v48, 0.0
    %v110 = vsel %vm73, %v64, 0.0
    %v111 = vadd.f32 %v109, %v110
    %112 = vadd.xlane.f32.xlu0 %v111
    %v113 = vpop.xlane.xlu0 %112
    %v114 = vmul.f32 %v78, 0.00390625
    %v115 = vmul.f32 %v83, 0.00390625
    %v116 = vmul.f32 %v88, 0.00390625
    %v117 = vmul.f32 %v93, 0.00390625
    %v118 = vmul.f32 %v98, 0.00390625
    %v119 = vmul.f32 %v103, 0.00390625
    %v120 = vmul.f32 %v108, 0.00390625
    %v121 = vmul.f32 %v113, 0.00390625
    %v122 = vld [vmem:[#allocation5] sm:$0xf]
    %v123 = vld [vmem:[%s2] sm:$0x1]
    %v125 = vlaneseq
    %v126 = vshrl.u32 %v125, 7
    %v127 = vsub.s32 0, %v126
    %v128 = vrot.slane %v123, %v127
    %v138 = vlaneseq
    %v139 = vand.u32 %v138, 127
    %v140 = vlaneseq
    %v141 = vshrl.u32 %v140, 7
    %v142 = vsub.s32 %v139, %v141
    %v143 = vrot.slane %v114, %v142
    %v144 = vlaneseq
    %v145 = vshrl.u32 %v144, 7
    %v146 = vsub.s32 %v139, %v145
    %v147 = vrot.slane %v115, %v146
    %v148 = vlaneseq
    %v149 = vshrl.u32 %v148, 7
    %v150 = vsub.s32 %v139, %v149
    %v151 = vrot.slane %v116, %v150
    %v152 = vlaneseq
    %v153 = vshrl.u32 %v152, 7
    %v154 = vsub.s32 %v139, %v153
    %v155 = vrot.slane %v117, %v154
    %v156 = vlaneseq
    %v157 = vshrl.u32 %v156, 7
    %v158 = vsub.s32 %v139, %v157
    %v159 = vrot.slane %v118, %v158
    %v160 = vlaneseq
    %v161 = vshrl.u32 %v160, 7
    %v162 = vsub.s32 %v139, %v161
    %v163 = vrot.slane %v119, %v162
    %v164 = vlaneseq
    %v165 = vshrl.u32 %v164, 7
    %v166 = vsub.s32 %v139, %v165
    %v167 = vrot.slane %v120, %v166
    %v168 = vlaneseq
    %v169 = vshrl.u32 %v168, 7
    %v170 = vsub.s32 %v139, %v169
    %v171 = vrot.slane %v121, %v170
    %vm172 = vcmask 1041409
    %v173 = vsel %vm172, %v147, %v143
    %vm174 = vcmask 1042434
    %v175 = vsel %vm174, %v151, %v173
    %vm176 = vcmask 1043459
    %v177 = vsel %vm176, %v155, %v175
    %vm178 = vcmask 1044484
    %v179 = vsel %vm178, %v159, %v177
    %vm180 = vcmask 1045509
    %v181 = vsel %vm180, %v163, %v179
    %vm182 = vcmask 1046534
    %v183 = vsel %vm182, %v167, %v181
    %vm184 = vcmask 1047559
    %v185 = vsel %vm184, %v171, %v183
    %vm186 = vcmask 31744
    %v187 = vsel %vm186, %v185, 0
    %v190 = vsel %vm73, %v122, 0
    %192 = vmatprep.subr.mxu0 0.0
    %193 = vmatpush1.msra.mxu0 %v190
    %194 = vmatprep.subr.mxu0 0.0
    %195 = vmatpush1.msra.mxu0 0.0
    %196 = vmatprep.subr.mxu0 0.0
    %197 = vmatpush1.msra.mxu0 0.0
    %198 = vmatprep.subr.mxu0 0.0
    %199 = vmatpush1.msra.mxu0 0.0
    %200 = vmatprep.subr.mxu0 0.0
    %201 = vmatpush1.msra.mxu0 0.0
    %202 = vmatprep.subr.mxu0 0.0
    %203 = vmatpush1.msra.mxu0 0.0
    %204 = vmatprep.subr.mxu0 0.0
    %205 = vmatpush1.msra.mxu0 0.0
    %206 = vmatprep.subr.mxu0 0.0
    %207 = vmatpush1.msra.mxu0 0.0
    %208 = vmatprep.subr.mxu0 0.0
    %209 = vmatpush1.msra.mxu0 0.0
    %210 = vmatprep.subr.mxu0 0.0
    %211 = vmatpush1.msra.mxu0 0.0
    %212 = vmatprep.subr.mxu0 0.0
    %213 = vmatpush1.msra.mxu0 0.0
    %214 = vmatprep.subr.mxu0 0.0
    %215 = vmatpush1.msra.mxu0 0.0
    %216 = vmatprep.subr.mxu0 0.0
    %217 = vmatpush1.msra.mxu0 0.0
    %218 = vmatprep.subr.mxu0 0.0
    %219 = vmatpush1.msra.mxu0 0.0
    %220 = vmatprep.subr.mxu0 0.0
    %221 = vmatpush1.msra.mxu0 0.0
    %222 = vmatprep.subr.mxu0 0.0
    %223 = vmatpush1.msra.mxu0 0.0
    %224 = vmatprep.subr.mxu0 0.0
    %225 = vmatpush1.msra.mxu0 0.0
    %226 = vmatprep.subr.mxu0 0.0
    %227 = vmatpush1.msra.mxu0 0.0
    %228 = vmatprep.subr.mxu0 0.0
    %229 = vmatpush1.msra.mxu0 0.0
    %230 = vmatprep.subr.mxu0 0.0
    %231 = vmatpush1.msra.mxu0 0.0
    %232 = vmatprep.subr.mxu0 0.0
    %233 = vmatpush1.msra.mxu0 0.0
    %234 = vmatprep.subr.mxu0 0.0
    %235 = vmatpush1.msra.mxu0 0.0
    %236 = vmatprep.subr.mxu0 0.0
    %237 = vmatpush1.msra.mxu0 0.0
    %238 = vmatprep.subr.mxu0 0.0
    %239 = vmatpush1.msra.mxu0 0.0
    %240 = vmatprep.subr.mxu0 0.0
    %241 = vmatpush1.msra.mxu0 0.0
    %242 = vmatprep.subr.mxu0 0.0
    %243 = vmatpush1.msra.mxu0 0.0
    %244 = vmatprep.subr.mxu0 0.0
    %245 = vmatpush1.msra.mxu0 0.0
    %246 = vmatprep.subr.mxu0 0.0
    %247 = vmatpush1.msra.mxu0 0.0
    %248 = vmatprep.subr.mxu0 0.0
    %249 = vmatpush1.msra.mxu0 0.0
    %250 = vmatprep.subr.mxu0 0.0
    %251 = vmatpush1.msra.mxu0 0.0
    %252 = vmatprep.subr.mxu0 0.0
    %253 = vmatpush1.msra.mxu0 0.0
    %254 = vmatprep.subr.mxu0 0.0
    %255 = vmatpush1.msra.mxu0 0.0
    %256 = vmatprep.mubr.f32.mxu0 0.0
    %257 = vmatmul.mubr.f32.gmra.mrb[0].mxu0 %v187
    %v258 = vpop.f32.mrb[0].mxu0
    %v259 = vadd.f32 %v128, %v258
    %v260 = vpop.f32.mrb[0].mxu0
    %261 = vdwg.mxu0
    %262 = vst [vmem:[#allocation7] sm:$0xff] %v259
    // Predicated region
    $region22: #{tpu_custom_call.1} parent=1 // pred_check
      _
    $region23: #{tpu_custom_call.1} parent=1 // pred_check_branch
      %264 = sbr.rel (0) target = $region25
    $region24: #{tpu_custom_call.1} parent=1 // pred_region
      %s266 = ssub.s32 128, 128
      %267 = vsyncadd [#allocation4], %s266
      %s269 = sshll.u32 [#allocation7], 4
      %s270 = int_to_ptr.vmem [resolvable:$true] %s269
      %272 = dma.vmem_to_hbm [thread:$0]  %s270, 128, %s3, [#allocation4]
    $region25: #{tpu_custom_call.1} parent=1 // pred_fallthru
      _
    // Predicated region
    $region26: #{tpu_custom_call.1} parent=1 // pred_check
      _
    $region27: #{tpu_custom_call.1} parent=1 // pred_check_branch
      %274 = sbr.rel (0) target = $region29
    $region28: #{tpu_custom_call.1} parent=1 // pred_region
      %275 = dma.done [#allocation4], 128
    $region29: #{tpu_custom_call.1} parent=1 // pred_fallthru
      _
    %276 = vsyncpa [#allocation3], 1
    %277 = vsyncpa [#allocation6], 1
    %278 = vsyncpa [#allocation4], 1

</llo_original>
